<compile_context>
chip_gen: v6e
topology: v6e:2x2x1
jax: 0.10.0
libtpu: 0.0.40
codegen_flags: <defaults>
</compile_context>

<pallas_src>
import functools

import jax
import jax.numpy as jnp
from jax.experimental import pallas as pl
from jax.experimental.pallas import tpu as pltpu


def _round_up(n, m):
    return (n + m - 1) // m * m


def _ebgeo_kernel(
    tgy_ref,    # (tile_T, dim_z)   f32  cat([tg_X, y], 1) rows for this tile
    w1y_ref,    # (dim_z, dim_as)   cdt  fc1_y weight (in, out)
    b1y_ref,    # (1, dim_as)       f32
    w1f_ref,    # (dim_as, dim_as)  cdt  fc1_xy weight, y_feature half
    b1e_ref,    # (1, dim_as)       f32  effective bias: x_mean @ W1_x + b1
    w2_ref,     # (dim_as, dim_as)  cdt
    b2_ref,     # (1, dim_as)       f32
    w3_ref,     # (dim_as, dim_as)  cdt
    b3_ref,     # (1, dim_as)       f32
    w4_ref,     # (dim_as, 2)       cdt
    b4_ref,     # (1, 2)            f32
    out_ref,    # (tile_T, 2)       f32
):
    f32 = jnp.float32
    cdt = w1y_ref.dtype  # MXU operand dtype (bf16 on the fast path, else f32)

    def mm(a, w_ref):
        return jnp.dot(a.astype(cdt), w_ref[...], preferred_element_type=f32)

    # y_feature = tanh(fc1_y(cat([tg_X, y], 1)))
    y_feat = jnp.tanh(mm(tgy_ref[...], w1y_ref) + b1y_ref[...])

    # xy1 = tanh(fc1_xy(cat([x_feature, y_feature], 1)))
    #     = tanh(y_feature @ W1_yf + (x_mean @ W1_x + b1))   [x part hoisted]
    xy1 = jnp.tanh(mm(y_feat, w1f_ref) + b1e_ref[...])

    # residual blocks (elementwise kept in f32)
    xy2 = jnp.tanh(mm(xy1, w2_ref) + b2_ref[...]) + xy1
    xy3 = jnp.tanh(mm(xy2, w3_ref) + b3_ref[...]) + xy2

    # score = fc4_xy(xy3)
    out_ref[...] = (mm(xy3, w4_ref) + b4_ref[...]).astype(out_ref.dtype)


def init_params(key, dim_in):
    """Deterministic synthetic parameters (PyTorch nn.Linear shapes, (out, in))."""
    dim_z = dim_in + 2
    dim_as = dim_z * 2
    keys = jax.random.split(key, 10)

    def lin(kw, kb, out_d, in_d):
        w = jax.random.normal(kw, (out_d, in_d), jnp.float32) * 0.1
        b = jax.random.normal(kb, (out_d,), jnp.float32) * 0.1
        return w, b

    p = {}
    p["fc1_y"] = lin(keys[0], keys[1], dim_as, dim_z)
    p["fc1_xy"] = lin(keys[2], keys[3], dim_as, dim_as * 2)
    p["fc2_xy"] = lin(keys[4], keys[5], dim_as, dim_as)
    p["fc3_xy"] = lin(keys[6], keys[7], dim_as, dim_as)
    p["fc4_xy"] = lin(keys[8], keys[9], 2, dim_as)
    return p


@functools.partial(jax.jit, static_argnames=("dim_in", "tile_t", "use_bf16"))
def ebgeo_predictor_forward(x, tg_X, y, params, *, dim_in, tile_t=512, use_bf16=True):
    """Wrapper: one-shot glue (concat, mean-pool bias fold, weight re-layout)
    + a T-tiled Pallas kernel for the hot path."""
    f32 = jnp.float32
    cdt = jnp.bfloat16 if use_bf16 else f32

    dim_z = dim_in + 2
    dim_as = dim_z * 2
    T = tg_X.shape[0]

    x = x.astype(f32)
    tg_X = tg_X.astype(f32)
    y = y.astype(f32)
    # torch: if y.shape[0] != T: y = y.repeat(T, 1)  (consistent when y has 1 row)
    if y.shape[0] != T:
        y = jnp.broadcast_to(y, (T, y.shape[1]))

    # --- tiny one-shot XLA glue, hoisted out of the per-tile hot loop ---
    tgy = jnp.concatenate([tg_X, y], axis=1)             # (T, dim_z)
    x_mean = jnp.mean(x, axis=0, keepdims=True)          # (1, dim_as)

    w1y, b1y = params["fc1_y"]
    w1, b1 = params["fc1_xy"]
    w2, b2 = params["fc2_xy"]
    w3, b3 = params["fc3_xy"]
    w4, b4 = params["fc4_xy"]

    w1_t = w1.T                                           # (2*dim_as, dim_as)
    w1_x, w1_yf = w1_t[:dim_as, :], w1_t[dim_as:, :]
    # fold the broadcast x_feature matmul into the fc1_xy bias, once
    b1_eff = x_mean @ w1_x + b1.reshape(1, -1)            # (1, dim_as)

    # --- row tiling: tile multiple of 8, pad T up to a tile multiple ---
    tile = min(tile_t, _round_up(max(T, 1), 8))
    tile = _round_up(tile, 8)
    T_pad = _round_up(T, tile)
    if T_pad != T:
        tgy = jnp.pad(tgy, ((0, T_pad - T), (0, 0)))      # padded rows sliced off below

    args = (
        tgy,
        w1y.T.astype(cdt), b1y.reshape(1, -1).astype(f32),
        w1_yf.astype(cdt), b1_eff.astype(f32),
        w2.T.astype(cdt), b2.reshape(1, -1).astype(f32),
        w3.T.astype(cdt), b3.reshape(1, -1).astype(f32),
        w4.T.astype(cdt), b4.reshape(1, -1).astype(f32),
    )

    def resident_spec(a):
        # full-array block, constant block index -> stays in VMEM across the grid
        return pl.BlockSpec(a.shape, lambda i, nd=a.ndim: (0,) * nd)

    in_specs = [pl.BlockSpec((tile, dim_z), lambda i: (i, 0))] + [
        resident_spec(a) for a in args[1:]
    ]

    # Advisory cost estimate so XLA schedules the custom call sensibly.
    flops = 2 * T_pad * (dim_z * dim_as + 3 * dim_as * dim_as + dim_as * 2)
    transcendentals = 4 * T_pad * dim_as
    weight_bytes = sum(int(a.size) * a.dtype.itemsize for a in args[1:])
    bytes_accessed = int(tgy.size) * 4 + T_pad * 2 * 4 + weight_bytes

    out = pl.pallas_call(
        _ebgeo_kernel,
        out_shape=jax.ShapeDtypeStruct((T_pad, 2), f32),
        grid_spec=pltpu.PrefetchScalarGridSpec(
            num_scalar_prefetch=0,
            grid=(T_pad // tile,),
            in_specs=in_specs,
            out_specs=pl.BlockSpec((tile, 2), lambda i: (i, 0)),
        ),
        compiler_params=pltpu.CompilerParams(
            dimension_semantics=("parallel",),   # megacore split of the T axis
        ),
        cost_estimate=pl.CostEstimate(
            flops=flops,
            transcendentals=transcendentals,
            bytes_accessed=bytes_accessed,
        ),
    )(*args)
    return out[:T]


def ebgeo_predictor_ref(x, tg_X, y, params):
    """Plain-JAX reference mirroring the PyTorch forward (for verification)."""
    T = tg_X.shape[0]
    x_feature = jnp.mean(x, axis=0, keepdims=True)
    x_feature = jnp.broadcast_to(x_feature, (T, x_feature.shape[1]))
    if y.shape[0] != T:
        y = jnp.broadcast_to(y, (T, y.shape[1]))

    def lin(p, v):
        w, b = p
        return v @ w.T + b

    y_feature = jnp.tanh(lin(params["fc1_y"], jnp.concatenate([tg_X, y], axis=1)))
    xy0 = jnp.concatenate([x_feature, y_feature], axis=1)
    xy1 = jnp.tanh(lin(params["fc1_xy"], xy0))
    xy2 = jnp.tanh(lin(params["fc2_xy"], xy1)) + xy1
    xy3 = jnp.tanh(lin(params["fc3_xy"], xy2)) + xy2
    return lin(params["fc4_xy"], xy3)


if __name__ == "__main__":
    key = jax.random.PRNGKey(0)
    k_par, k_x, k_tg, k_y = jax.random.split(key, 4)

    dim_in = 14          # -> dim_z = 16, dim_as = 32
    N_x = 16             # rows of x (mean-pooled away)
    T = 8                # number of target samples

    params = init_params(k_par, dim_in)
    x = jax.random.normal(k_x, (N_x, 2 * (dim_in + 2)), jnp.float32)   # (16, 32)
    tg_X = jax.random.normal(k_tg, (T, dim_in), jnp.float32)           # (8, 14)
    y = jax.random.normal(k_y, (1, 2), jnp.float32)                    # (1, 2) -> repeated to T

    ref = ebgeo_predictor_ref(x, tg_X, y, params)

    # 1) f32 MXU operands: strict numerical check.
    out_f32 = jax.block_until_ready(
        ebgeo_predictor_forward(x, tg_X, y, params, dim_in=dim_in, use_bf16=False))
    assert out_f32.shape == (T, 2), out_f32.shape
    assert jnp.allclose(out_f32, ref, atol=1e-5, rtol=1e-5), (out_f32, ref)

    # 2) bf16 MXU operands (fast path), f32 accumulation + f32 elementwise.
    out_bf16 = jax.block_until_ready(
        ebgeo_predictor_forward(x, tg_X, y, params, dim_in=dim_in, use_bf16=True))
    assert out_bf16.shape == (T, 2), out_bf16.shape
    assert jnp.allclose(out_bf16, ref, atol=3e-2, rtol=3e-2), (out_bf16, ref)

    # 3) Multi-tile grid path: T not a tile multiple (exercises padding + pipelining).
    T2 = 40
    tg_X2 = jax.random.normal(jax.random.PRNGKey(1), (T2, dim_in), jnp.float32)
    ref2 = ebgeo_predictor_ref(x, tg_X2, y, params)
    out2 = jax.block_until_ready(
        ebgeo_predictor_forward(x, tg_X2, y, params, dim_in=dim_in,
                                tile_t=16, use_bf16=False))
    assert out2.shape == (T2, 2), out2.shape
    assert jnp.allclose(out2, ref2, atol=1e-5, rtol=1e-5), (out2, ref2)

    print("KERNEL_OK")
</pallas_src>

<mosaic_0001>
module attributes {stable_mosaic.version = 11 : i64} {
  func.func @_ebgeo_kernel(%arg0: i32, %arg1: memref<8x16xf32, #tpu.memory_space<vmem>>, %arg2: memref<16x32xf32, #tpu.memory_space<vmem>>, %arg3: memref<1x32xf32, #tpu.memory_space<vmem>>, %arg4: memref<32x32xf32, #tpu.memory_space<vmem>>, %arg5: memref<1x32xf32, #tpu.memory_space<vmem>>, %arg6: memref<32x32xf32, #tpu.memory_space<vmem>>, %arg7: memref<1x32xf32, #tpu.memory_space<vmem>>, %arg8: memref<32x32xf32, #tpu.memory_space<vmem>>, %arg9: memref<1x32xf32, #tpu.memory_space<vmem>>, %arg10: memref<32x2xf32, #tpu.memory_space<vmem>>, %arg11: memref<1x2xf32, #tpu.memory_space<vmem>>, %arg12: memref<8x2xf32, #tpu.memory_space<vmem>>) attributes {dimension_semantics = [#tpu.dimension_semantics<parallel>], iteration_bounds = array<i64: 1>, scalar_prefetch = 0 : i64, scratch_operands = 0 : i64, tpu.core_type = #tpu.core_type<tc>, window_params = [{transform_indices = @transform_0, window_bounds = array<i64: 8, 16>}, {pipeline_mode = #tpu.pipeline_mode<synchronous>, transform_indices = @transform_1, window_bounds = array<i64: 16, 32>}, {pipeline_mode = #tpu.pipeline_mode<synchronous>, transform_indices = @transform_2, window_bounds = array<i64: 1, 32>}, {pipeline_mode = #tpu.pipeline_mode<synchronous>, transform_indices = @transform_3, window_bounds = array<i64: 32, 32>}, {pipeline_mode = #tpu.pipeline_mode<synchronous>, transform_indices = @transform_4, window_bounds = array<i64: 1, 32>}, {pipeline_mode = #tpu.pipeline_mode<synchronous>, transform_indices = @transform_5, window_bounds = array<i64: 32, 32>}, {pipeline_mode = #tpu.pipeline_mode<synchronous>, transform_indices = @transform_6, window_bounds = array<i64: 1, 32>}, {pipeline_mode = #tpu.pipeline_mode<synchronous>, transform_indices = @transform_7, window_bounds = array<i64: 32, 32>}, {pipeline_mode = #tpu.pipeline_mode<synchronous>, transform_indices = @transform_8, window_bounds = array<i64: 1, 32>}, {pipeline_mode = #tpu.pipeline_mode<synchronous>, transform_indices = @transform_9, window_bounds = array<i64: 32, 2>}, {pipeline_mode = #tpu.pipeline_mode<synchronous>, transform_indices = @transform_10, window_bounds = array<i64: 1, 2>}, {transform_indices = @transform_11, window_bounds = array<i64: 8, 2>}]} {
    %c0 = arith.constant 0 : index
    %c0_0 = arith.constant 0 : index
    %0 = vector.load %arg1[%c0, %c0_0] : memref<8x16xf32, #tpu.memory_space<vmem>>, vector<8x16xf32>
    %c0_1 = arith.constant 0 : index
    %c0_2 = arith.constant 0 : index
    %1 = vector.load %arg2[%c0_1, %c0_2] : memref<16x32xf32, #tpu.memory_space<vmem>>, vector<16x32xf32>
    %cst = arith.constant dense<0.000000e+00> : vector<8x32xf32>
    %2 = tpu.matmul %0, %1, %cst {dimension_numbers = #tpu.dot_dimension_numbers<[1], [0], [0], [1], [0, 0, 1, 1], [], []>} : vector<8x16xf32>, vector<16x32xf32>, vector<8x32xf32> -> vector<8x32xf32>
    %c0_3 = arith.constant 0 : index
    %c0_4 = arith.constant 0 : index
    %3 = vector.load %arg3[%c0_3, %c0_4] : memref<1x32xf32, #tpu.memory_space<vmem>>, vector<1x32xf32>
    %4 = vector.broadcast %3 : vector<1x32xf32> to vector<8x32xf32>
    %5 = arith.addf %2, %4 : vector<8x32xf32>
    %6 = math.tanh %5 : vector<8x32xf32>
    %c0_5 = arith.constant 0 : index
    %c0_6 = arith.constant 0 : index
    %7 = vector.load %arg4[%c0_5, %c0_6] : memref<32x32xf32, #tpu.memory_space<vmem>>, vector<32x32xf32>
    %cst_7 = arith.constant dense<0.000000e+00> : vector<8x32xf32>
    %8 = tpu.matmul %6, %7, %cst_7 {dimension_numbers = #tpu.dot_dimension_numbers<[1], [0], [0], [1], [0, 0, 1, 1], [], []>} : vector<8x32xf32>, vector<32x32xf32>, vector<8x32xf32> -> vector<8x32xf32>
    %c0_8 = arith.constant 0 : index
    %c0_9 = arith.constant 0 : index
    %9 = vector.load %arg5[%c0_8, %c0_9] : memref<1x32xf32, #tpu.memory_space<vmem>>, vector<1x32xf32>
    %10 = vector.broadcast %9 : vector<1x32xf32> to vector<8x32xf32>
    %11 = arith.addf %8, %10 : vector<8x32xf32>
    %12 = math.tanh %11 : vector<8x32xf32>
    %c0_10 = arith.constant 0 : index
    %c0_11 = arith.constant 0 : index
    %13 = vector.load %arg6[%c0_10, %c0_11] : memref<32x32xf32, #tpu.memory_space<vmem>>, vector<32x32xf32>
    %cst_12 = arith.constant dense<0.000000e+00> : vector<8x32xf32>
    %14 = tpu.matmul %12, %13, %cst_12 {dimension_numbers = #tpu.dot_dimension_numbers<[1], [0], [0], [1], [0, 0, 1, 1], [], []>} : vector<8x32xf32>, vector<32x32xf32>, vector<8x32xf32> -> vector<8x32xf32>
    %c0_13 = arith.constant 0 : index
    %c0_14 = arith.constant 0 : index
    %15 = vector.load %arg7[%c0_13, %c0_14] : memref<1x32xf32, #tpu.memory_space<vmem>>, vector<1x32xf32>
    %16 = vector.broadcast %15 : vector<1x32xf32> to vector<8x32xf32>
    %17 = arith.addf %14, %16 : vector<8x32xf32>
    %18 = math.tanh %17 : vector<8x32xf32>
    %19 = arith.addf %18, %12 : vector<8x32xf32>
    %c0_15 = arith.constant 0 : index
    %c0_16 = arith.constant 0 : index
    %20 = vector.load %arg8[%c0_15, %c0_16] : memref<32x32xf32, #tpu.memory_space<vmem>>, vector<32x32xf32>
    %cst_17 = arith.constant dense<0.000000e+00> : vector<8x32xf32>
    %21 = tpu.matmul %19, %20, %cst_17 {dimension_numbers = #tpu.dot_dimension_numbers<[1], [0], [0], [1], [0, 0, 1, 1], [], []>} : vector<8x32xf32>, vector<32x32xf32>, vector<8x32xf32> -> vector<8x32xf32>
    %c0_18 = arith.constant 0 : index
    %c0_19 = arith.constant 0 : index
    %22 = vector.load %arg9[%c0_18, %c0_19] : memref<1x32xf32, #tpu.memory_space<vmem>>, vector<1x32xf32>
    %23 = vector.broadcast %22 : vector<1x32xf32> to vector<8x32xf32>
    %24 = arith.addf %21, %23 : vector<8x32xf32>
    %25 = math.tanh %24 : vector<8x32xf32>
    %26 = arith.addf %25, %19 : vector<8x32xf32>
    %c0_20 = arith.constant 0 : index
    %c0_21 = arith.constant 0 : index
    %27 = vector.load %arg10[%c0_20, %c0_21] : memref<32x2xf32, #tpu.memory_space<vmem>>, vector<32x2xf32>
    %cst_22 = arith.constant dense<0.000000e+00> : vector<8x2xf32>
    %28 = tpu.matmul %26, %27, %cst_22 {dimension_numbers = #tpu.dot_dimension_numbers<[1], [0], [0], [1], [0, 0, 1, 1], [], []>} : vector<8x32xf32>, vector<32x2xf32>, vector<8x2xf32> -> vector<8x2xf32>
    %c0_23 = arith.constant 0 : index
    %c0_24 = arith.constant 0 : index
    %29 = vector.load %arg11[%c0_23, %c0_24] : memref<1x2xf32, #tpu.memory_space<vmem>>, vector<1x2xf32>
    %30 = vector.broadcast %29 : vector<1x2xf32> to vector<8x2xf32>
    %31 = arith.addf %28, %30 : vector<8x2xf32>
    %c0_25 = arith.constant 0 : index
    %c0_26 = arith.constant 0 : index
    %32 = vector.load %arg12[%c0_25, %c0_26] : memref<8x2xf32, #tpu.memory_space<vmem>>, vector<8x2xf32>
    tpu.vector_store %arg12[%c0_25, %c0_26], %31 {strides = array<i32>} : memref<8x2xf32, #tpu.memory_space<vmem>>, vector<8x2xf32>,
    return
  }
  func.func @transform_0(%arg0: i32) -> (i32, i32) {
    %c0_i32 = arith.constant 0 : i32
    %c0_i32_0 = arith.constant 0 : i32
    return %arg0, %c0_i32 : i32, i32
  }
  func.func @transform_1(%arg0: i32) -> (i32, i32) {
    %c0_i32 = arith.constant 0 : i32
    %c0_i32_0 = arith.constant 0 : i32
    %c0_i32_1 = arith.constant 0 : i32
    return %c0_i32, %c0_i32_0 : i32, i32
  }
  func.func @transform_2(%arg0: i32) -> (i32, i32) {
    %c0_i32 = arith.constant 0 : i32
    %c0_i32_0 = arith.constant 0 : i32
    %c0_i32_1 = arith.constant 0 : i32
    return %c0_i32, %c0_i32_0 : i32, i32
  }
  func.func @transform_3(%arg0: i32) -> (i32, i32) {
    %c0_i32 = arith.constant 0 : i32
    %c0_i32_0 = arith.constant 0 : i32
    %c0_i32_1 = arith.constant 0 : i32
    return %c0_i32, %c0_i32_0 : i32, i32
  }
  func.func @transform_4(%arg0: i32) -> (i32, i32) {
    %c0_i32 = arith.constant 0 : i32
    %c0_i32_0 = arith.constant 0 : i32
    %c0_i32_1 = arith.constant 0 : i32
    return %c0_i32, %c0_i32_0 : i32, i32
  }
  func.func @transform_5(%arg0: i32) -> (i32, i32) {
    %c0_i32 = arith.constant 0 : i32
    %c0_i32_0 = arith.constant 0 : i32
    %c0_i32_1 = arith.constant 0 : i32
    return %c0_i32, %c0_i32_0 : i32, i32
  }
  func.func @transform_6(%arg0: i32) -> (i32, i32) {
    %c0_i32 = arith.constant 0 : i32
    %c0_i32_0 = arith.constant 0 : i32
    %c0_i32_1 = arith.constant 0 : i32
    return %c0_i32, %c0_i32_0 : i32, i32
  }
  func.func @transform_7(%arg0: i32) -> (i32, i32) {
    %c0_i32 = arith.constant 0 : i32
    %c0_i32_0 = arith.constant 0 : i32
    %c0_i32_1 = arith.constant 0 : i32
    return %c0_i32, %c0_i32_0 : i32, i32
  }
  func.func @transform_8(%arg0: i32) -> (i32, i32) {
    %c0_i32 = arith.constant 0 : i32
    %c0_i32_0 = arith.constant 0 : i32
    %c0_i32_1 = arith.constant 0 : i32
    return %c0_i32, %c0_i32_0 : i32, i32
  }
  func.func @transform_9(%arg0: i32) -> (i32, i32) {
    %c0_i32 = arith.constant 0 : i32
    %c0_i32_0 = arith.constant 0 : i32
    %c0_i32_1 = arith.constant 0 : i32
    return %c0_i32, %c0_i32_0 : i32, i32
  }
  func.func @transform_10(%arg0: i32) -> (i32, i32) {
    %c0_i32 = arith.constant 0 : i32
    %c0_i32_0 = arith.constant 0 : i32
    %c0_i32_1 = arith.constant 0 : i32
    return %c0_i32, %c0_i32_0 : i32, i32
  }
  func.func @transform_11(%arg0: i32) -> (i32, i32) {
    %c0_i32 = arith.constant 0 : i32
    %c0_i32_0 = arith.constant 0 : i32
    return %arg0, %c0_i32 : i32, i32
  }
}

</mosaic_0001>

<llo_original>
// kernel: ebgeo_predictor_forward.1
$region0: #{ebgeo_predictor_forward.1}
  #allocation0 [shape = 'u32[]', space=smem, size = 0x4, offset = 0x4, fixed_abs, tag = 'smem constant byte address 0x4 - core index']
  #allocation1 [shape = 'u32[144,128]{1,0:T(1,128)}', space=vmem, size = 0x12000, scoped, tag = 'internal scratch']
  %s0 = inlined_call_operand.vmem [shape: f32[8,16], index: 0, kind: input, shape index: {}]
  %s1 = inlined_call_operand.vmem [shape: f32[16,32], index: 1, kind: input, shape index: {}]
  %s2 = inlined_call_operand.vmem [shape: f32[1,32], index: 2, kind: input, shape index: {}]
  %s3 = inlined_call_operand.vmem [shape: f32[32,32], index: 3, kind: input, shape index: {}]
  %s4 = inlined_call_operand.vmem [shape: f32[1,32], index: 4, kind: input, shape index: {}]
  %s5 = inlined_call_operand.vmem [shape: f32[32,32], index: 5, kind: input, shape index: {}]
  %s6 = inlined_call_operand.vmem [shape: f32[1,32], index: 6, kind: input, shape index: {}]
  %s7 = inlined_call_operand.vmem [shape: f32[32,32], index: 7, kind: input, shape index: {}]
  %s8 = inlined_call_operand.vmem [shape: f32[1,32], index: 8, kind: input, shape index: {}]
  %s9 = inlined_call_operand.vmem [shape: f32[32,2], index: 9, kind: input, shape index: {}]
  %s10 = inlined_call_operand.vmem [shape: f32[1,2], index: 10, kind: input, shape index: {}]
  %s11 = inlined_call_operand.vmem [shape: f32[8,2], index: 11, kind: output, shape index: {}]
  %s12 = sld [smem:[#allocation0]]
  $region54: #{ebgeo_predictor_forward.1} parent=0
    _
  %s14 = ssub.s32 1, %s12
  %s15 = scalar_select 0, %s14, %s12
  // Predicated region
  $region2: #{ebgeo_predictor_forward.1} parent=0 // pred_check
    _
  $region3: #{ebgeo_predictor_forward.1} parent=0 // pred_check_branch
    %17 = sbr.rel (0) target = $region5
  $region4: #{ebgeo_predictor_forward.1} parent=0 // pred_region
    _
  $region5: #{ebgeo_predictor_forward.1} parent=0 // pred_fallthru
    _
  // Predicated region
  $region6: #{ebgeo_predictor_forward.1} parent=0 // pred_check
    _
  $region7: #{ebgeo_predictor_forward.1} parent=0 // pred_check_branch
    %19 = sbr.rel (0) target = $region9
  $region8: #{ebgeo_predictor_forward.1} parent=0 // pred_region
    _
  $region9: #{ebgeo_predictor_forward.1} parent=0 // pred_fallthru
    _
  // Predicated region
  $region10: #{ebgeo_predictor_forward.1} parent=0 // pred_check
    _
  $region11: #{ebgeo_predictor_forward.1} parent=0 // pred_check_branch
    %21 = sbr.rel (0) target = $region13
  $region12: #{ebgeo_predictor_forward.1} parent=0 // pred_region
    _
  $region13: #{ebgeo_predictor_forward.1} parent=0 // pred_fallthru
    _
  // Predicated region
  $region14: #{ebgeo_predictor_forward.1} parent=0 // pred_check
    _
  $region15: #{ebgeo_predictor_forward.1} parent=0 // pred_check_branch
    %23 = sbr.rel (0) target = $region17
  $region16: #{ebgeo_predictor_forward.1} parent=0 // pred_region
    _
  $region17: #{ebgeo_predictor_forward.1} parent=0 // pred_fallthru
    _
  // Predicated region
  $region18: #{ebgeo_predictor_forward.1} parent=0 // pred_check
    _
  $region19: #{ebgeo_predictor_forward.1} parent=0 // pred_check_branch
    %25 = sbr.rel (0) target = $region21
  $region20: #{ebgeo_predictor_forward.1} parent=0 // pred_region
    _
  $region21: #{ebgeo_predictor_forward.1} parent=0 // pred_fallthru
    _
  // Predicated region
  $region22: #{ebgeo_predictor_forward.1} parent=0 // pred_check
    _
  $region23: #{ebgeo_predictor_forward.1} parent=0 // pred_check_branch
    %27 = sbr.rel (0) target = $region25
  $region24: #{ebgeo_predictor_forward.1} parent=0 // pred_region
    _
  $region25: #{ebgeo_predictor_forward.1} parent=0 // pred_fallthru
    _
  // Predicated region
  $region26: #{ebgeo_predictor_forward.1} parent=0 // pred_check
    _
  $region27: #{ebgeo_predictor_forward.1} parent=0 // pred_check_branch
    %29 = sbr.rel (0) target = $region29
  $region28: #{ebgeo_predictor_forward.1} parent=0 // pred_region
    _
  $region29: #{ebgeo_predictor_forward.1} parent=0 // pred_fallthru
    _
  // Predicated region
  $region30: #{ebgeo_predictor_forward.1} parent=0 // pred_check
    _
  $region31: #{ebgeo_predictor_forward.1} parent=0 // pred_check_branch
    %31 = sbr.rel (0) target = $region33
  $region32: #{ebgeo_predictor_forward.1} parent=0 // pred_region
    _
  $region33: #{ebgeo_predictor_forward.1} parent=0 // pred_fallthru
    _
  // Predicated region
  $region34: #{ebgeo_predictor_forward.1} parent=0 // pred_check
    _
  $region35: #{ebgeo_predictor_forward.1} parent=0 // pred_check_branch
    %33 = sbr.rel (0) target = $region37
  $region36: #{ebgeo_predictor_forward.1} parent=0 // pred_region
    _
  $region37: #{ebgeo_predictor_forward.1} parent=0 // pred_fallthru
    _
  // Predicated region
  $region38: #{ebgeo_predictor_forward.1} parent=0 // pred_check
    _
  $region39: #{ebgeo_predictor_forward.1} parent=0 // pred_check_branch
    %35 = sbr.rel (0) target = $region41
  $region40: #{ebgeo_predictor_forward.1} parent=0 // pred_region
    _
  $region41: #{ebgeo_predictor_forward.1} parent=0 // pred_fallthru
    _
  // Predicated region
  $region42: #{ebgeo_predictor_forward.1} parent=0 // pred_check
    _
  $region43: #{ebgeo_predictor_forward.1} parent=0 // pred_check_branch
    %37 = sbr.rel (0) target = $region45
  $region44: #{ebgeo_predictor_forward.1} parent=0 // pred_region
    _
  $region45: #{ebgeo_predictor_forward.1} parent=0 // pred_fallthru
    _
  %v38 = vld [vmem:[%s0] sm:$0xff]
  %v39 = vld [vmem:[%s1] sm:$0xff]
  %v40 = vld [vmem:[%s1 + $0x8] sm:$0xff]
  %v41 = vld [vmem:[%s2] sm:$0x1]
  %v43 = vlaneseq
  %v44 = vshrl.u32 %v43, 7
  %v45 = vsub.s32 0, %v44
  %v46 = vrot.slane %v41, %v45
  %vm48 = vcmask 130048
  %v50 = vsel %vm48, %v38, 0
  %52 = vmatprep.subr.mxu0 0.0
  %53 = vmatpush1.msra.mxu0 0.0
  %54 = vmatprep.subr.mxu0 0.0
  %55 = vmatpush1.msra.mxu0 0.0
  %56 = vmatprep.subr.mxu0 0.0
  %57 = vmatpush1.msra.mxu0 0.0
  %58 = vmatprep.subr.mxu0 0.0
  %59 = vmatpush1.msra.mxu0 0.0
  %60 = vmatprep.subr.mxu0 0.0
  %61 = vmatpush1.msra.mxu0 0.0
  %62 = vmatprep.subr.mxu0 0.0
  %63 = vmatpush1.msra.mxu0 0.0
  %64 = vmatprep.subr.mxu0 0.0
  %65 = vmatpush1.msra.mxu0 0.0
  %66 = vmatprep.subr.mxu0 0.0
  %67 = vmatpush1.msra.mxu0 0.0
  %68 = vmatprep.subr.mxu0 0.0
  %69 = vmatpush1.msra.mxu0 0.0
  %70 = vmatprep.subr.mxu0 0.0
  %71 = vmatpush1.msra.mxu0 0.0
  %72 = vmatprep.subr.mxu0 0.0
  %73 = vmatpush1.msra.mxu0 0.0
  %74 = vmatprep.subr.mxu0 0.0
  %75 = vmatpush1.msra.mxu0 0.0
  %76 = vmatprep.subr.mxu0 0.0
  %77 = vmatpush1.msra.mxu0 0.0
  %78 = vmatprep.subr.mxu0 0.0
  %79 = vmatpush1.msra.mxu0 0.0
  %80 = vmatprep.subr.mxu0 0.0
  %81 = vmatpush1.msra.mxu0 %v40
  %82 = vmatprep.subr.mxu0 0.0
  %83 = vmatpush1.msra.mxu0 %v39
  %84 = vmatprep.subr.mxu0 0.0
  %85 = vmatpush2.msra.mxu0 0.0
  %86 = vmatprep.subr.mxu0 0.0
  %87 = vmatpush2.msra.mxu0 0.0
  %88 = vmatprep.subr.mxu0 0.0
  %89 = vmatpush2.msra.mxu0 0.0
  %90 = vmatprep.subr.mxu0 0.0
  %91 = vmatpush2.msra.mxu0 0.0
  %92 = vmatprep.subr.mxu0 0.0
  %93 = vmatpush2.msra.mxu0 0.0
  %94 = vmatprep.subr.mxu0 0.0
  %95 = vmatpush2.msra.mxu0 0.0
  %96 = vmatprep.subr.mxu0 0.0
  %97 = vmatpush2.msra.mxu0 0.0
  %98 = vmatprep.subr.mxu0 0.0
  %99 = vmatpush2.msra.mxu0 0.0
  %100 = vmatprep.subr.mxu0 0.0
  %101 = vmatpush2.msra.mxu0 0.0
  %102 = vmatprep.subr.mxu0 0.0
  %103 = vmatpush2.msra.mxu0 0.0
  %104 = vmatprep.subr.mxu0 0.0
  %105 = vmatpush2.msra.mxu0 0.0
  %106 = vmatprep.subr.mxu0 0.0
  %107 = vmatpush2.msra.mxu0 0.0
  %108 = vmatprep.subr.mxu0 0.0
  %109 = vmatpush2.msra.mxu0 0.0
  %110 = vmatprep.subr.mxu0 0.0
  %111 = vmatpush2.msra.mxu0 0.0
  %112 = vmatprep.subr.mxu0 0.0
  %113 = vmatpush2.msra.mxu0 0.0
  %114 = vmatprep.subr.mxu0 0.0
  %115 = vmatpush2.msra.mxu0 0.0
  %116 = vmatprep.mubr.f32.mxu0 0.0
  %117 = vmatmul.mubr.f32.gmra.mxu0 %v50
  %v118 = vpop.f32.mrf.mxu0
  %v119 = vadd.f32 %v46, %v118
  %v120 = vpop.f32.mrf.mxu0
  %121 = vdwg.mxu0
  %v122 = vtanh.pop %v119
  %v123 = vld [vmem:[%s3] sm:$0xff]
  %v124 = vld [vmem:[%s3 + $0x8] sm:$0xff]
  %v125 = vld [vmem:[%s3 + $0x10] sm:$0xff]
  %v126 = vld [vmem:[%s3 + $0x18] sm:$0xff]
  %v127 = vld [vmem:[%s4] sm:$0x1]
  %v129 = vlaneseq
  %v130 = vshrl.u32 %v129, 7
  %v131 = vsub.s32 0, %v130
  %v132 = vrot.slane %v127, %v131
  %vm134 = vcmask 261120
  %v136 = vsel %vm134, %v122, 0
  %138 = vmatprep.subr.mxu0 0.0
  %139 = vmatpush1.msra.mxu0 0.0
  %140 = vmatprep.subr.mxu0 0.0
  %141 = vmatpush1.msra.mxu0 0.0
  %142 = vmatprep.subr.mxu0 0.0
  %143 = vmatpush1.msra.mxu0 0.0
  %144 = vmatprep.subr.mxu0 0.0
  %145 = vmatpush1.msra.mxu0 0.0
  %146 = vmatprep.subr.mxu0 0.0
  %147 = vmatpush1.msra.mxu0 0.0
  %148 = vmatprep.subr.mxu0 0.0
  %149 = vmatpush1.msra.mxu0 0.0
  %150 = vmatprep.subr.mxu0 0.0
  %151 = vmatpush1.msra.mxu0 0.0
  %152 = vmatprep.subr.mxu0 0.0
  %153 = vmatpush1.msra.mxu0 0.0
  %154 = vmatprep.subr.mxu0 0.0
  %155 = vmatpush1.msra.mxu0 0.0
  %156 = vmatprep.subr.mxu0 0.0
  %157 = vmatpush1.msra.mxu0 0.0
  %158 = vmatprep.subr.mxu0 0.0
  %159 = vmatpush1.msra.mxu0 0.0
  %160 = vmatprep.subr.mxu0 0.0
  %161 = vmatpush1.msra.mxu0 0.0
  %162 = vmatprep.subr.mxu0 0.0
  %163 = vmatpush1.msra.mxu0 %v126
  %164 = vmatprep.subr.mxu0 0.0
  %165 = vmatpush1.msra.mxu0 %v125
  %166 = vmatprep.subr.mxu0 0.0
  %167 = vmatpush1.msra.mxu0 %v124
  %168 = vmatprep.subr.mxu0 0.0
  %169 = vmatpush1.msra.mxu0 %v123
  %170 = vmatprep.subr.mxu0 0.0
  %171 = vmatpush2.msra.mxu0 0.0
  %172 = vmatprep.subr.mxu0 0.0
  %173 = vmatpush2.msra.mxu0 0.0
  %174 = vmatprep.subr.mxu0 0.0
  %175 = vmatpush2.msra.mxu0 0.0
  %176 = vmatprep.subr.mxu0 0.0
  %177 = vmatpush2.msra.mxu0 0.0
  %178 = vmatprep.subr.mxu0 0.0
  %179 = vmatpush2.msra.mxu0 0.0
  %180 = vmatprep.subr.mxu0 0.0
  %181 = vmatpush2.msra.mxu0 0.0
  %182 = vmatprep.subr.mxu0 0.0
  %183 = vmatpush2.msra.mxu0 0.0
  %184 = vmatprep.subr.mxu0 0.0
  %185 = vmatpush2.msra.mxu0 0.0
  %186 = vmatprep.subr.mxu0 0.0
  %187 = vmatpush2.msra.mxu0 0.0
  %188 = vmatprep.subr.mxu0 0.0
  %189 = vmatpush2.msra.mxu0 0.0
  %190 = vmatprep.subr.mxu0 0.0
  %191 = vmatpush2.msra.mxu0 0.0
  %192 = vmatprep.subr.mxu0 0.0
  %193 = vmatpush2.msra.mxu0 0.0
  %194 = vmatprep.subr.mxu0 0.0
  %195 = vmatpush2.msra.mxu0 0.0
  %196 = vmatprep.subr.mxu0 0.0
  %197 = vmatpush2.msra.mxu0 0.0
  %198 = vmatprep.subr.mxu0 0.0
  %199 = vmatpush2.msra.mxu0 0.0
  %200 = vmatprep.subr.mxu0 0.0
  %201 = vmatpush2.msra.mxu0 0.0
  %202 = vmatprep.mubr.f32.mxu0 0.0
  %203 = vmatmul.mubr.f32.gmra.mxu0 %v136
  %v204 = vpop.f32.mrf.mxu0
  %v205 = vadd.f32 %v132, %v204
  %v206 = vpop.f32.mrf.mxu0
  %207 = vdwg.mxu0
  %v208 = vtanh.pop %v205
  %v209 = vld [vmem:[%s5] sm:$0xff]
  %v210 = vld [vmem:[%s5 + $0x8] sm:$0xff]
  %v211 = vld [vmem:[%s5 + $0x10] sm:$0xff]
  %v212 = vld [vmem:[%s5 + $0x18] sm:$0xff]
  %v213 = vld [vmem:[%s6] sm:$0x1]
  %v215 = vlaneseq
  %v216 = vshrl.u32 %v215, 7
  %v217 = vsub.s32 0, %v216
  %v218 = vrot.slane %v213, %v217
  %v221 = vsel %vm134, %v208, 0
  %223 = vmatprep.subr.mxu0 0.0
  %224 = vmatpush1.msra.mxu0 0.0
  %225 = vmatprep.subr.mxu0 0.0
  %226 = vmatpush1.msra.mxu0 0.0
  %227 = vmatprep.subr.mxu0 0.0
  %228 = vmatpush1.msra.mxu0 0.0
  %229 = vmatprep.subr.mxu0 0.0
  %230 = vmatpush1.msra.mxu0 0.0
  %231 = vmatprep.subr.mxu0 0.0
  %232 = vmatpush1.msra.mxu0 0.0
  %233 = vmatprep.subr.mxu0 0.0
  %234 = vmatpush1.msra.mxu0 0.0
  %235 = vmatprep.subr.mxu0 0.0
  %236 = vmatpush1.msra.mxu0 0.0
  %237 = vmatprep.subr.mxu0 0.0
  %238 = vmatpush1.msra.mxu0 0.0
  %239 = vmatprep.subr.mxu0 0.0
  %240 = vmatpush1.msra.mxu0 0.0
  %241 = vmatprep.subr.mxu0 0.0
  %242 = vmatpush1.msra.mxu0 0.0
  %243 = vmatprep.subr.mxu0 0.0
  %244 = vmatpush1.msra.mxu0 0.0
  %245 = vmatprep.subr.mxu0 0.0
  %246 = vmatpush1.msra.mxu0 0.0
  %247 = vmatprep.subr.mxu0 0.0
  %248 = vmatpush1.msra.mxu0 %v212
  %249 = vmatprep.subr.mxu0 0.0
  %250 = vmatpush1.msra.mxu0 %v211
  %251 = vmatprep.subr.mxu0 0.0
  %252 = vmatpush1.msra.mxu0 %v210
  %253 = vmatprep.subr.mxu0 0.0
  %254 = vmatpush1.msra.mxu0 %v209
  %255 = vmatprep.subr.mxu0 0.0
  %256 = vmatpush2.msra.mxu0 0.0
  %257 = vmatprep.subr.mxu0 0.0
  %258 = vmatpush2.msra.mxu0 0.0
  %259 = vmatprep.subr.mxu0 0.0
  %260 = vmatpush2.msra.mxu0 0.0
  %261 = vmatprep.subr.mxu0 0.0
  %262 = vmatpush2.msra.mxu0 0.0
  %263 = vmatprep.subr.mxu0 0.0
  %264 = vmatpush2.msra.mxu0 0.0
  %265 = vmatprep.subr.mxu0 0.0
  %266 = vmatpush2.msra.mxu0 0.0
  %267 = vmatprep.subr.mxu0 0.0
  %268 = vmatpush2.msra.mxu0 0.0
  %269 = vmatprep.subr.mxu0 0.0
  %270 = vmatpush2.msra.mxu0 0.0
  %271 = vmatprep.subr.mxu0 0.0
  %272 = vmatpush2.msra.mxu0 0.0
  %273 = vmatprep.subr.mxu0 0.0
  %274 = vmatpush2.msra.mxu0 0.0
  %275 = vmatprep.subr.mxu0 0.0
  %276 = vmatpush2.msra.mxu0 0.0
  %277 = vmatprep.subr.mxu0 0.0
  %278 = vmatpush2.msra.mxu0 0.0
  %279 = vmatprep.subr.mxu0 0.0
  %280 = vmatpush2.msra.mxu0 0.0
  %281 = vmatprep.subr.mxu0 0.0
  %282 = vmatpush2.msra.mxu0 0.0
  %283 = vmatprep.subr.mxu0 0.0
  %284 = vmatpush2.msra.mxu0 0.0
  %285 = vmatprep.subr.mxu0 0.0
  %286 = vmatpush2.msra.mxu0 0.0
  %287 = vmatprep.mubr.f32.mxu0 0.0
  %288 = vmatmul.mubr.f32.gmra.mxu0 %v221
  %v289 = vpop.f32.mrf.mxu0
  %v290 = vadd.f32 %v218, %v289
  %v291 = vpop.f32.mrf.mxu0
  %292 = vdwg.mxu0
  %v293 = vtanh.pop %v290
  %v294 = vadd.f32 %v293, %v208
  %v295 = vld [vmem:[%s7] sm:$0xff]
  %v296 = vld [vmem:[%s7 + $0x8] sm:$0xff]
  %v297 = vld [vmem:[%s7 + $0x10] sm:$0xff]
  %v298 = vld [vmem:[%s7 + $0x18] sm:$0xff]
  %v299 = vld [vmem:[%s8] sm:$0x1]
  %v301 = vlaneseq
  %v302 = vshrl.u32 %v301, 7
  %v303 = vsub.s32 0, %v302
  %v304 = vrot.slane %v299, %v303
  %v307 = vsel %vm134, %v294, 0
  %309 = vmatprep.subr.mxu0 0.0
  %310 = vmatpush1.msra.mxu0 0.0
  %311 = vmatprep.subr.mxu0 0.0
  %312 = vmatpush1.msra.mxu0 0.0
  %313 = vmatprep.subr.mxu0 0.0
  %314 = vmatpush1.msra.mxu0 0.0
  %315 = vmatprep.subr.mxu0 0.0
  %316 = vmatpush1.msra.mxu0 0.0
  %317 = vmatprep.subr.mxu0 0.0
  %318 = vmatpush1.msra.mxu0 0.0
  %319 = vmatprep.subr.mxu0 0.0
  %320 = vmatpush1.msra.mxu0 0.0
  %321 = vmatprep.subr.mxu0 0.0
  %322 = vmatpush1.msra.mxu0 0.0
  %323 = vmatprep.subr.mxu0 0.0
  %324 = vmatpush1.msra.mxu0 0.0
  %325 = vmatprep.subr.mxu0 0.0
  %326 = vmatpush1.msra.mxu0 0.0
  %327 = vmatprep.subr.mxu0 0.0
  %328 = vmatpush1.msra.mxu0 0.0
  %329 = vmatprep.subr.mxu0 0.0
  %330 = vmatpush1.msra.mxu0 0.0
  %331 = vmatprep.subr.mxu0 0.0
  %332 = vmatpush1.msra.mxu0 0.0
  %333 = vmatprep.subr.mxu0 0.0
  %334 = vmatpush1.msra.mxu0 %v298
  %335 = vmatprep.subr.mxu0 0.0
  %336 = vmatpush1.msra.mxu0 %v297
  %337 = vmatprep.subr.mxu0 0.0
  %338 = vmatpush1.msra.mxu0 %v296
  %339 = vmatprep.subr.mxu0 0.0
  %340 = vmatpush1.msra.mxu0 %v295
  %341 = vmatprep.subr.mxu0 0.0
  %342 = vmatpush2.msra.mxu0 0.0
  %343 = vmatprep.subr.mxu0 0.0
  %344 = vmatpush2.msra.mxu0 0.0
  %345 = vmatprep.subr.mxu0 0.0
  %346 = vmatpush2.msra.mxu0 0.0
  %347 = vmatprep.subr.mxu0 0.0
  %348 = vmatpush2.msra.mxu0 0.0
  %349 = vmatprep.subr.mxu0 0.0
  %350 = vmatpush2.msra.mxu0 0.0
  %351 = vmatprep.subr.mxu0 0.0
  %352 = vmatpush2.msra.mxu0 0.0
  %353 = vmatprep.subr.mxu0 0.0
  %354 = vmatpush2.msra.mxu0 0.0
  %355 = vmatprep.subr.mxu0 0.0
  %356 = vmatpush2.msra.mxu0 0.0
  %357 = vmatprep.subr.mxu0 0.0
  %358 = vmatpush2.msra.mxu0 0.0
  %359 = vmatprep.subr.mxu0 0.0
  %360 = vmatpush2.msra.mxu0 0.0
  %361 = vmatprep.subr.mxu0 0.0
  %362 = vmatpush2.msra.mxu0 0.0
  %363 = vmatprep.subr.mxu0 0.0
  %364 = vmatpush2.msra.mxu0 0.0
  %365 = vmatprep.subr.mxu0 0.0
  %366 = vmatpush2.msra.mxu0 0.0
  %367 = vmatprep.subr.mxu0 0.0
  %368 = vmatpush2.msra.mxu0 0.0
  %369 = vmatprep.subr.mxu0 0.0
  %370 = vmatpush2.msra.mxu0 0.0
  %371 = vmatprep.subr.mxu0 0.0
  %372 = vmatpush2.msra.mxu0 0.0
  %373 = vmatprep.mubr.f32.mxu0 0.0
  %374 = vmatmul.mubr.f32.gmra.mxu0 %v307
  %v375 = vpop.f32.mrf.mxu0
  %v376 = vadd.f32 %v304, %v375
  %v377 = vpop.f32.mrf.mxu0
  %378 = vdwg.mxu0
  %v379 = vtanh.pop %v376
  %v380 = vadd.f32 %v379, %v294
  %v381 = vld [vmem:[%s9] sm:$0xff]
  %v382 = vld [vmem:[%s9 + $0x8] sm:$0xff]
  %v383 = vld [vmem:[%s9 + $0x10] sm:$0xff]
  %v384 = vld [vmem:[%s9 + $0x18] sm:$0xff]
  %v385 = vld [vmem:[%s10] sm:$0x1]
  %v387 = vlaneseq
  %v388 = vshrl.u32 %v387, 7
  %v389 = vsub.s32 0, %v388
  %v390 = vrot.slane %v385, %v389
  %v393 = vsel %vm134, %v380, 0
  %395 = vmatprep.subr.mxu0 0.0
  %396 = vmatpush1.msra.mxu0 0.0
  %397 = vmatprep.subr.mxu0 0.0
  %398 = vmatpush1.msra.mxu0 0.0
  %399 = vmatprep.subr.mxu0 0.0
  %400 = vmatpush1.msra.mxu0 0.0
  %401 = vmatprep.subr.mxu0 0.0
  %402 = vmatpush1.msra.mxu0 0.0
  %403 = vmatprep.subr.mxu0 0.0
  %404 = vmatpush1.msra.mxu0 0.0
  %405 = vmatprep.subr.mxu0 0.0
  %406 = vmatpush1.msra.mxu0 0.0
  %407 = vmatprep.subr.mxu0 0.0
  %408 = vmatpush1.msra.mxu0 0.0
  %409 = vmatprep.subr.mxu0 0.0
  %410 = vmatpush1.msra.mxu0 0.0
  %411 = vmatprep.subr.mxu0 0.0
  %412 = vmatpush1.msra.mxu0 0.0
  %413 = vmatprep.subr.mxu0 0.0
  %414 = vmatpush1.msra.mxu0 0.0
  %415 = vmatprep.subr.mxu0 0.0
  %416 = vmatpush1.msra.mxu0 0.0
  %417 = vmatprep.subr.mxu0 0.0
  %418 = vmatpush1.msra.mxu0 0.0
  %419 = vmatprep.subr.mxu0 0.0
  %420 = vmatpush1.msra.mxu0 %v384
  %421 = vmatprep.subr.mxu0 0.0
  %422 = vmatpush1.msra.mxu0 %v383
  %423 = vmatprep.subr.mxu0 0.0
  %424 = vmatpush1.msra.mxu0 %v382
  %425 = vmatprep.subr.mxu0 0.0
  %426 = vmatpush1.msra.mxu0 %v381
  %427 = vmatprep.subr.mxu0 0.0
  %428 = vmatpush2.msra.mxu0 0.0
  %429 = vmatprep.subr.mxu0 0.0
  %430 = vmatpush2.msra.mxu0 0.0
  %431 = vmatprep.subr.mxu0 0.0
  %432 = vmatpush2.msra.mxu0 0.0
  %433 = vmatprep.subr.mxu0 0.0
  %434 = vmatpush2.msra.mxu0 0.0
  %435 = vmatprep.subr.mxu0 0.0
  %436 = vmatpush2.msra.mxu0 0.0
  %437 = vmatprep.subr.mxu0 0.0
  %438 = vmatpush2.msra.mxu0 0.0
  %439 = vmatprep.subr.mxu0 0.0
  %440 = vmatpush2.msra.mxu0 0.0
  %441 = vmatprep.subr.mxu0 0.0
  %442 = vmatpush2.msra.mxu0 0.0
  %443 = vmatprep.subr.mxu0 0.0
  %444 = vmatpush2.msra.mxu0 0.0
  %445 = vmatprep.subr.mxu0 0.0
  %446 = vmatpush2.msra.mxu0 0.0
  %447 = vmatprep.subr.mxu0 0.0
  %448 = vmatpush2.msra.mxu0 0.0
  %449 = vmatprep.subr.mxu0 0.0
  %450 = vmatpush2.msra.mxu0 0.0
  %451 = vmatprep.subr.mxu0 0.0
  %452 = vmatpush2.msra.mxu0 0.0
  %453 = vmatprep.subr.mxu0 0.0
  %454 = vmatpush2.msra.mxu0 0.0
  %455 = vmatprep.subr.mxu0 0.0
  %456 = vmatpush2.msra.mxu0 0.0
  %457 = vmatprep.subr.mxu0 0.0
  %458 = vmatpush2.msra.mxu0 0.0
  %459 = vmatprep.mubr.f32.mxu0 0.0
  %460 = vmatmul.mubr.f32.gmra.mxu0 %v393
  %v461 = vpop.f32.mrf.mxu0
  %v462 = vadd.f32 %v390, %v461
  %v463 = vpop.f32.mrf.mxu0
  %464 = vdwg.mxu0
  %vm465 = vcmask 15360
  %466 = vst.msk [vmem:[%s11] sm:$0xff] %vm465, %v462
  // Predicated region
  $region46: #{ebgeo_predictor_forward.1} parent=0 // pred_check
    _
  $region47: #{ebgeo_predictor_forward.1} parent=0 // pred_check_branch
    %468 = sbr.rel (0) target = $region49
  $region48: #{ebgeo_predictor_forward.1} parent=0 // pred_region
    _
  $region49: #{ebgeo_predictor_forward.1} parent=0 // pred_fallthru
    _
  // Predicated region
  $region50: #{ebgeo_predictor_forward.1} parent=0 // pred_check
    _
  $region51: #{ebgeo_predictor_forward.1} parent=0 // pred_check_branch
    %470 = sbr.rel (0) target = $region53
  $region52: #{ebgeo_predictor_forward.1} parent=0 // pred_region
    _
  $region53: #{ebgeo_predictor_forward.1} parent=0 // pred_fallthru
    _

</llo_original>
